<compile_context>
chip_gen: v7x
topology: tpu7x:2x2x1
jax: 0.10.0
libtpu: 0.0.40
codegen_flags: <defaults>
</compile_context>

<pallas_src>
import functools
import math

import jax
import jax.numpy as jnp
from jax.experimental import pallas as pl
from jax.experimental.pallas import tpu as pltpu


def _round_up(x, m):
    return ((x + m - 1) // m) * m


# ------------------------- per-generation VMEM planning -----------------------

def _vmem_params():
    """Returns (tile_budget_bytes, vmem_limit_bytes) for the current TPU gen."""
    kind = ""
    try:
        kind = jax.devices()[0].device_kind.lower()
    except Exception:
        pass
    if "v7" in kind:
        # v7x: only 64 MiB physical VMEM per TensorCore -> keep a tighter budget.
        return 40 << 20, 48 << 20
    # v5e / v6e (and v4): 128 MiB physical VMEM -> allow much larger tiles.
    return 56 << 20, 64 << 20


def _plan_tiles(B, D, R_slab):
    """Pick the batch tile, W buffering, and vmem limit from an honest budget."""
    tile_budget, vmem_limit = _vmem_params()

    w_tile_bytes = 4 * D * R_slab
    # W's block index is constant across the grid, so the second pipeline buffer
    # is pure VMEM waste; only bother requesting single-buffering when W is big
    # enough to matter (keeps the default, well-tested path at small scale).
    single_buffer_w = w_tile_bytes > (2 << 20)
    w_bytes = w_tile_bytes * (1 if single_buffer_w else 2)

    if B < 8:
        # Block spans the full (tiny) batch; satisfies the (8,128) rule because
        # the block equals the full array dim.
        return B, single_buffer_w, vmem_limit

    per_row = 4 * 2 * (2 * D + R_slab)          # eps + y + out tiles, double-buffered
    b_blk = min(1024, (B // 8) * 8)             # prefer >=256 so the MXU M dim fills
    while b_blk > 8 and w_bytes + b_blk * per_row > tile_budget:
        b_blk = max(8, ((b_blk // 2) // 8) * 8)

    # TODO(synk): if W alone (4*D*R_slab) ever exceeds ~16-24 MiB (relevant on v7x),
    # switch to a second "arbitrary" K grid axis over D with a VMEM f32 accumulator
    # instead of keeping W fully resident.
    vmem_limit = max(vmem_limit, w_bytes + b_blk * per_row + (4 << 20))
    return b_blk, single_buffer_w, vmem_limit


# ----------------------------- Pallas kernel ----------------------------------

def masked_proj_kernel(eps_ref, y_ref, w_ref, out_ref, *, sq_lane):
    """Fused hot path over one batch tile.

    x   = eps * (y != 0)                         (b_blk, D)
    V   = x @ W_pad                              (b_blk, R_slab)  cols >= R are 0
    sq  = sum(x*x, axis=-1)                      (b_blk, 1)
    out = V with sq packed into lane `sq_lane`   -> one lane-dense store
    """
    x = eps_ref[...] * (y_ref[...] != 0.0).astype(eps_ref.dtype)
    v = jnp.dot(x, w_ref[...], preferred_element_type=jnp.float32)     # MXU
    sq = jnp.sum(x * x, axis=-1, keepdims=True)                        # (b_blk, 1)
    lane = jax.lax.broadcasted_iota(jnp.int32, (1, v.shape[1]), 1)
    # W_pad column `sq_lane` is all zeros, so packing sq there is exact.
    out_ref[...] = v + jnp.where(lane == sq_lane, sq, 0.0)


# --------------------------- pallas_call wrapper -------------------------------

def masked_proj(eps2d, y2d, w):
    """One fused, B-tiled pallas_call.  Returns V (B, R) and sq (B,)."""
    B, D = eps2d.shape
    R = w.shape[1]
    R_slab = _round_up(R + 1, 128)          # +1 lane for the packed sum-of-squares

    b_blk, single_buffer_w, vmem_limit = _plan_tiles(B, D, R_slab)

    # Only the (tiny, parameter-only) W is padded; eps/y stream unpadded from HBM.
    # Zero columns beyond R contribute nothing, so the packing/sq trick is exact.
    w_p = jnp.zeros((D, R_slab), jnp.float32).at[:, :R].set(w)

    if single_buffer_w:
        w_spec = pl.BlockSpec((D, R_slab), lambda i: (0, 0),
                              pipeline_mode=pl.Buffered(1))
    else:
        w_spec = pl.BlockSpec((D, R_slab), lambda i: (0, 0))

    out = pl.pallas_call(
        functools.partial(masked_proj_kernel, sq_lane=R),
        out_shape=jax.ShapeDtypeStruct((B, R_slab), jnp.float32),
        grid=(pl.cdiv(B, b_blk),),
        in_specs=[
            pl.BlockSpec((b_blk, D), lambda i: (i, 0)),
            pl.BlockSpec((b_blk, D), lambda i: (i, 0)),
            w_spec,                                      # W stays resident
        ],
        out_specs=pl.BlockSpec((b_blk, R_slab), lambda i: (i, 0)),
        compiler_params=pltpu.CompilerParams(
            dimension_semantics=("parallel",),           # megacore / v7x 2-TC sharding
            vmem_limit_bytes=vmem_limit,
        ),
        cost_estimate=pl.CostEstimate(
            flops=2 * B * D * R_slab,
            transcendentals=0,
            bytes_accessed=4 * (2 * B * D + D * R_slab + B * R_slab),
        ),
    )(eps2d, y2d, w_p)

    # Partial last batch block: garbage rows are never written back (masked store),
    # and each output row depends only on its own input row, so no contamination.
    return out[:, :R], out[:, R]


# ------------------------------ forward (loss) ---------------------------------

def mgd_loss_full_eye(eps_t, y_t, L_n, L_q, sigma, *, rank_n, rank_q,
                      sigma_init=1.0, sigma_minimum=0.001):
    """Pallas implementation of MGD_loss_full_eye.forward (dynamic_reg cov loss)."""
    B, Q, N = eps_t.shape
    D = Q * N

    # _diag_bias = softplus_inv(sigma_init**2) = log(expm1(sigma_init**2))
    diag_bias = math.log(math.expm1(sigma_init ** 2)) if sigma_init > 0.0 else 0.0

    # --- parameter setup (plain JAX glue, parameter-only, tiny) ---
    Lq = L_q / math.sqrt(rank_q)
    Ln = L_n / math.sqrt(rank_n)
    W = jnp.kron(Lq, Ln).astype(jnp.float32)       # (D, R); row order matches flatten(Q, N)
    R = W.shape[1]
    d = jax.nn.softplus(sigma[0] + diag_bias) + sigma_minimum ** 2   # scalar cov_diag value

    # --- Pallas hot path: mask + low-rank projection + per-row sum of squares ---
    # NOTE(perf review): inputs could be streamed as bf16 (+ precomputed mask) for
    # ~2x HBM traffic reduction, but the module contract is f32 so we keep f32 here.
    V, sq = masked_proj(eps_t.reshape(B, D), y_t.reshape(B, D), W)   # (B, R), (B,)

    # Gram matrix depends only on parameters -> hoisted out of the Pallas path.
    G = W.T @ W                                                      # (R, R)

    # --- LowRankMultivariateNormal log_prob (capacitance trick) ---
    cap = jnp.eye(R, dtype=jnp.float32) + G / d                      # I + W^T D^-1 W
    # TODO(synk): Cholesky / triangular solve of the small RxR capacitance matrix has
    # no clean Pallas equivalent; kept in plain JAX.
    L = jnp.linalg.cholesky(cap)
    log_det = 2.0 * jnp.sum(jnp.log(jnp.diagonal(L))) + D * jnp.log(d)

    wt_dinv_x = V / d                                                # W^T D^-1 x   (B, R)
    z = jax.scipy.linalg.solve_triangular(L, wt_dinv_x.T, lower=True)  # (R, B)
    mahal = sq / d - jnp.sum(z * z, axis=0)                          # (B,)

    log_prob = -0.5 * (D * math.log(2.0 * math.pi) + log_det + mahal)
    return jnp.mean(-log_prob)


# ----------------------------- pure-JAX reference -------------------------------

def ref_loss(eps_t, y_t, L_n, L_q, sigma, *, rank_n, rank_q,
             sigma_init=1.0, sigma_minimum=0.001):
    B, Q, N = eps_t.shape
    D = Q * N
    diag_bias = math.log(math.expm1(sigma_init ** 2)) if sigma_init > 0.0 else 0.0
    W = jnp.kron(L_q / math.sqrt(rank_q), L_n / math.sqrt(rank_n)).astype(jnp.float32)
    d = jax.nn.softplus(sigma[0] + diag_bias) + sigma_minimum ** 2
    x = (eps_t * (y_t != 0.0).astype(eps_t.dtype)).reshape(B, D)
    Sigma = W @ W.T + d * jnp.eye(D, dtype=jnp.float32)
    _, logdet = jnp.linalg.slogdet(Sigma)
    sol = jnp.linalg.solve(Sigma, x.T)                 # (D, B)
    mahal = jnp.sum(x.T * sol, axis=0)
    log_prob = -0.5 * (D * math.log(2.0 * math.pi) + logdet + mahal)
    return jnp.mean(-log_prob)


# ---------------------------------- main -----------------------------------------

if __name__ == "__main__":
    # Small shapes: B=2, seq_length Q=8, num_nodes N=16, rank_q=4, rank_n=8.
    B, Q, N = 2, 8, 16
    rank_q, rank_n = 4, 8
    scaling = 1.0

    key = jax.random.PRNGKey(0)
    k1, k2, k3, k4, k5, k6 = jax.random.split(key, 6)

    # Deterministic parameter init (matches shapes in __init__).
    L_n = jax.random.normal(k1, (N, rank_n), dtype=jnp.float32) * scaling
    L_q = jax.random.normal(k2, (Q, rank_q), dtype=jnp.float32) * scaling
    sigma = jax.random.normal(k3, (1,), dtype=jnp.float32)

    # Inputs (B, Q, N); sprinkle zeros in y_t so the mask matters.
    eps_t = jax.random.normal(k4, (B, Q, N), dtype=jnp.float32)
    y_t = jax.random.normal(k5, (B, Q, N), dtype=jnp.float32)
    y_t = jnp.where(jax.random.uniform(k6, (B, Q, N)) < 0.2, 0.0, y_t)

    loss = mgd_loss_full_eye(eps_t, y_t, L_n, L_q, sigma,
                             rank_n=rank_n, rank_q=rank_q)
    loss = jax.block_until_ready(loss)

    ref = jax.block_until_ready(
        ref_loss(eps_t, y_t, L_n, L_q, sigma, rank_n=rank_n, rank_q=rank_q))

    assert jnp.isfinite(loss), "loss is not finite"
    assert jnp.allclose(loss, ref, rtol=1e-3, atol=1e-3), (loss, ref)
    print("KERNEL_OK")
</pallas_src>

<mosaic_0001>
module attributes {stable_mosaic.version = 11 : i64} {
  func.func @masked_proj_kernel(%arg0: i32, %arg1: memref<2x128xf32, #tpu.memory_space<vmem>>, %arg2: memref<2x128xf32, #tpu.memory_space<vmem>>, %arg3: memref<128x128xf32, #tpu.memory_space<vmem>>, %arg4: memref<2x128xf32, #tpu.memory_space<vmem>>) attributes {dimension_semantics = [#tpu.dimension_semantics<parallel>], iteration_bounds = array<i64: 1>, scalar_prefetch = 0 : i64, scratch_operands = 0 : i64, tpu.core_type = #tpu.core_type<tc>, window_params = [{transform_indices = @transform_0, window_bounds = array<i64: 2, 128>}, {transform_indices = @transform_1, window_bounds = array<i64: 2, 128>}, {pipeline_mode = #tpu.pipeline_mode<synchronous>, transform_indices = @transform_2, window_bounds = array<i64: 128, 128>}, {transform_indices = @transform_3, window_bounds = array<i64: 2, 128>}]} {
    %c0 = arith.constant 0 : index
    %c0_0 = arith.constant 0 : index
    %0 = vector.load %arg1[%c0, %c0_0] : memref<2x128xf32, #tpu.memory_space<vmem>>, vector<2x128xf32>
    %c0_1 = arith.constant 0 : index
    %c0_2 = arith.constant 0 : index
    %1 = vector.load %arg2[%c0_1, %c0_2] : memref<2x128xf32, #tpu.memory_space<vmem>>, vector<2x128xf32>
    %cst = arith.constant 0.000000e+00 : f32
    %2 = vector.broadcast %cst : f32 to vector<2x128xf32>
    %3 = arith.cmpf one, %1, %2 : vector<2x128xf32>
    %4 = arith.extui %3 : vector<2x128xi1> to vector<2x128xi32>
    %5 = arith.sitofp %4 : vector<2x128xi32> to vector<2x128xf32>
    %6 = arith.mulf %0, %5 : vector<2x128xf32>
    %c0_3 = arith.constant 0 : index
    %c0_4 = arith.constant 0 : index
    %7 = vector.load %arg3[%c0_3, %c0_4] : memref<128x128xf32, #tpu.memory_space<vmem>>, vector<128x128xf32>
    %cst_5 = arith.constant dense<0.000000e+00> : vector<2x128xf32>
    %8 = tpu.matmul %6, %7, %cst_5 {dimension_numbers = #tpu.dot_dimension_numbers<[1], [0], [0], [1], [0, 0, 1, 1], [], []>} : vector<2x128xf32>, vector<128x128xf32>, vector<2x128xf32> -> vector<2x128xf32>
    %9 = arith.mulf %6, %6 : vector<2x128xf32>
    %cst_6 = arith.constant dense<0.000000e+00> : vector<2xf32>
    %10 = vector.multi_reduction <add>, %9, %cst_6 [1] : vector<2x128xf32> to vector<2xf32>
    %11 = vector.shape_cast %10 : vector<2xf32> to vector<2x1xf32>
    %12 = tpu.iota {dimensions = array<i32: 1>} : vector<1x128xi32>
    %c32_i32 = arith.constant 32 : i32
    %13 = vector.broadcast %c32_i32 : i32 to vector<1x128xi32>
    %14 = arith.cmpi eq, %12, %13 : vector<1x128xi32>
    %cst_7 = arith.constant 0.000000e+00 : f32
    %15 = vector.shape_cast %14 : vector<1x128xi1> to vector<1x128xi1>
    %16 = vector.broadcast %15 : vector<1x128xi1> to vector<2x128xi1>
    %17 = vector.shape_cast %11 : vector<2x1xf32> to vector<2x1xf32>
    %18 = vector.broadcast %17 : vector<2x1xf32> to vector<2x128xf32>
    %19 = vector.broadcast %cst_7 : f32 to vector<2x128xf32>
    %20 = arith.select %16, %18, %19 : vector<2x128xi1>, vector<2x128xf32>
    %21 = arith.addf %8, %20 : vector<2x128xf32>
    %c0_8 = arith.constant 0 : index
    %c0_9 = arith.constant 0 : index
    %22 = vector.load %arg4[%c0_8, %c0_9] : memref<2x128xf32, #tpu.memory_space<vmem>>, vector<2x128xf32>
    tpu.vector_store %arg4[%c0_8, %c0_9], %21 {strides = array<i32>} : memref<2x128xf32, #tpu.memory_space<vmem>>, vector<2x128xf32>,
    return
  }
  func.func @transform_0(%arg0: i32) -> (i32, i32) {
    %c0_i32 = arith.constant 0 : i32
    %c0_i32_0 = arith.constant 0 : i32
    return %arg0, %c0_i32 : i32, i32
  }
  func.func @transform_1(%arg0: i32) -> (i32, i32) {
    %c0_i32 = arith.constant 0 : i32
    %c0_i32_0 = arith.constant 0 : i32
    return %arg0, %c0_i32 : i32, i32
  }
  func.func @transform_2(%arg0: i32) -> (i32, i32) {
    %c0_i32 = arith.constant 0 : i32
    %c0_i32_0 = arith.constant 0 : i32
    %c0_i32_1 = arith.constant 0 : i32
    return %c0_i32, %c0_i32_0 : i32, i32
  }
  func.func @transform_3(%arg0: i32) -> (i32, i32) {
    %c0_i32 = arith.constant 0 : i32
    %c0_i32_0 = arith.constant 0 : i32
    return %arg0, %c0_i32 : i32, i32
  }
}

</mosaic_0001>

<llo_original>
// kernel: tpu_custom_call.1
$region0: #{tpu_custom_call.1}
  #allocation0 [shape = 'u32[]', space=smem, size = 0x4, offset = 0x4, fixed_abs, tag = 'smem constant byte address 0x4 - core index']
  #allocation1 [shape = 'u32[144,128]{1,0:T(1,128)}', space=vmem, size = 0x12000, scoped, tag = 'internal scratch']
  %s0 = inlined_call_operand.hbm [shape: f32[2,128], index: 0, kind: input, shape index: {}]
  %s1 = inlined_call_operand.hbm [shape: f32[2,128], index: 1, kind: input, shape index: {}]
  %s2 = inlined_call_operand.hbm [shape: f32[128,128], index: 2, kind: input, shape index: {}]
  %s3 = inlined_call_operand.hbm [shape: f32[2,128], index: 3, kind: output, shape index: {}]
  %s4 = sld [smem:[#allocation0]]
  $region34: #{tpu_custom_call.1} parent=0
    _
  %s6 = ssub.s32 1, %s4
  %s7 = scalar_select 0, %s6, %s4
  $region1: #{tpu_custom_call.1} parent=0
    #allocation2 [shape = 'u8[1024]{0}', space=vmem, size = 0x400, scoped, tag = 'input window, operand 0, single buffered']
    #allocation3 [shape = 's32[1]{0}', space=sflag, size = 0x4, scoped, tag = 'scoped memory for tpu_custom_call.1']
    #allocation4 [shape = 's32[1]{0}', space=sflag, size = 0x4, scoped, tag = 'scoped memory for tpu_custom_call.1']
    #allocation5 [shape = 'u8[1024]{0}', space=vmem, size = 0x400, scoped, tag = 'input window, operand 1, single buffered']
    #allocation6 [shape = 's32[1]{0}', space=sflag, size = 0x4, scoped, tag = 'scoped memory for tpu_custom_call.1']
    #allocation7 [shape = 'u8[65536]{0}', space=vmem, size = 0x10000, scoped, tag = 'input window, operand 2, single buffered']
    #allocation8 [shape = 'u8[1024]{0}', space=vmem, size = 0x400, scoped, tag = 'output window, operand 0, single buffered']
    %8 = vsyncpa [#allocation3], 0
    %9 = vsyncpa [#allocation6], 0
    %10 = vsyncpa [#allocation4], 0
    // Predicated region
    $region2: #{tpu_custom_call.1} parent=1 // pred_check
      _
    $region3: #{tpu_custom_call.1} parent=1 // pred_check_branch
      %12 = sbr.rel (0) target = $region5
    $region4: #{tpu_custom_call.1} parent=1 // pred_region
      %s14 = ssub.s32 32, 32
      %15 = vsyncadd [#allocation3], %s14
      %s17 = sshll.u32 [#allocation2], 4
      %s18 = int_to_ptr.vmem [resolvable:$true] %s17
      %20 = dma.hbm_to_vmem [thread:$0]  %s0, 32, %s18, [#allocation3]
    $region5: #{tpu_custom_call.1} parent=1 // pred_fallthru
      _
    // Predicated region
    $region6: #{tpu_custom_call.1} parent=1 // pred_check
      _
    $region7: #{tpu_custom_call.1} parent=1 // pred_check_branch
      %22 = sbr.rel (0) target = $region9
    $region8: #{tpu_custom_call.1} parent=1 // pred_region
      %s24 = ssub.s32 32, 32
      %25 = vsyncadd [#allocation6], %s24
      %s27 = sshll.u32 [#allocation5], 4
      %s28 = int_to_ptr.vmem [resolvable:$true] %s27
      %30 = dma.hbm_to_vmem [thread:$0]  %s1, 32, %s28, [#allocation6]
    $region9: #{tpu_custom_call.1} parent=1 // pred_fallthru
      _
    // Predicated region
    $region10: #{tpu_custom_call.1} parent=1 // pred_check
      _
    $region11: #{tpu_custom_call.1} parent=1 // pred_check_branch
      %32 = sbr.rel (0) target = $region13
    $region12: #{tpu_custom_call.1} parent=1 // pred_region
      %s34 = ssub.s32 2048, 2048
      %35 = vsyncadd [#allocation6], %s34
      %s36 = sshll.u32 [#allocation7], 4
      %s37 = int_to_ptr.vmem [resolvable:$true] %s36
      %42 = dma.hbm_to_vmem [thread:$0]  %s2, 2048, %s37, [#allocation6], 128, 128, 8
    $region13: #{tpu_custom_call.1} parent=1 // pred_fallthru
      _
    // Predicated region
    $region14: #{tpu_custom_call.1} parent=1 // pred_check
      _
    $region15: #{tpu_custom_call.1} parent=1 // pred_check_branch
      %44 = sbr.rel (0) target = $region17
    $region16: #{tpu_custom_call.1} parent=1 // pred_region
      %45 = dma.done [#allocation3], 32
    $region17: #{tpu_custom_call.1} parent=1 // pred_fallthru
      _
    // Predicated region
    $region18: #{tpu_custom_call.1} parent=1 // pred_check
      _
    $region19: #{tpu_custom_call.1} parent=1 // pred_check_branch
      %47 = sbr.rel (0) target = $region21
    $region20: #{tpu_custom_call.1} parent=1 // pred_region
      %48 = dma.done [#allocation6], 32
    $region21: #{tpu_custom_call.1} parent=1 // pred_fallthru
      _
    // Predicated region
    $region22: #{tpu_custom_call.1} parent=1 // pred_check
      _
    $region23: #{tpu_custom_call.1} parent=1 // pred_check_branch
      %50 = sbr.rel (0) target = $region25
    $region24: #{tpu_custom_call.1} parent=1 // pred_region
      %51 = dma.done [#allocation6], 2048
    $region25: #{tpu_custom_call.1} parent=1 // pred_fallthru
      _
    %v52 = vld [vmem:[#allocation2] sm:$0x3]
    %v53 = vld [vmem:[#allocation5] sm:$0x3]
    %vm54 = vcmp.ne.f32.partialorder %v53, 0.0
    %v55 = vsel %vm54, 1, 0
    %v56 = vcvt.s32.f32 %v55
    %v57 = vmul.f32 %v52, %v56
    %v58 = vld [vmem:[#allocation7] sm:$0xff]
    %v59 = vld [vmem:[#allocation7 + $0x8] sm:$0xff]
    %v60 = vld [vmem:[#allocation7 + $0x10] sm:$0xff]
    %v61 = vld [vmem:[#allocation7 + $0x18] sm:$0xff]
    %v62 = vld [vmem:[#allocation7 + $0x20] sm:$0xff]
    %v63 = vld [vmem:[#allocation7 + $0x28] sm:$0xff]
    %v64 = vld [vmem:[#allocation7 + $0x30] sm:$0xff]
    %v65 = vld [vmem:[#allocation7 + $0x38] sm:$0xff]
    %v66 = vld [vmem:[#allocation7 + $0x40] sm:$0xff]
    %v67 = vld [vmem:[#allocation7 + $0x48] sm:$0xff]
    %v68 = vld [vmem:[#allocation7 + $0x50] sm:$0xff]
    %v69 = vld [vmem:[#allocation7 + $0x58] sm:$0xff]
    %v70 = vld [vmem:[#allocation7 + $0x60] sm:$0xff]
    %v71 = vld [vmem:[#allocation7 + $0x68] sm:$0xff]
    %v72 = vld [vmem:[#allocation7 + $0x70] sm:$0xff]
    %v73 = vld [vmem:[#allocation7 + $0x78] sm:$0xff]
    %v74 = vmul.f32 %v57, %v57
    %vm75 = vcmask 1041408
    %v76 = vsel %vm75, %v74, 0.0
    %77 = vadd.xlane.f32.xlu0 %v76
    %v78 = vpop.xlane.xlu0 %77
    %v79 = vlaneseq
    %v80 = vand.u32 %v79, 127
    %vm81 = vcmp.eq.s32.totalorder %v80, 32
    %v82 = vsel %vm81, 1, 0
    %vm83 = vcmp.eq.s32.totalorder %v82, 1
    %v84 = vsel %vm83, %v78, 0.0
    %85 = vmatprep.subr.mxu0 0.0
    %86 = vmatpush1.msra.mxu0 %v58
    %87 = vmatprep.subr.mxu0 0.0
    %88 = vmatpush1.msra.mxu0 %v59
    %89 = vmatprep.subr.mxu0 0.0
    %90 = vmatpush1.msra.mxu0 %v60
    %91 = vmatprep.subr.mxu0 0.0
    %92 = vmatpush1.msra.mxu0 %v61
    %93 = vmatprep.subr.mxu0 0.0
    %94 = vmatpush1.msra.mxu0 %v62
    %95 = vmatprep.subr.mxu0 0.0
    %96 = vmatpush1.msra.mxu0 %v63
    %97 = vmatprep.subr.mxu0 0.0
    %98 = vmatpush1.msra.mxu0 %v64
    %99 = vmatprep.subr.mxu0 0.0
    %100 = vmatpush1.msra.mxu0 %v65
    %101 = vmatprep.subr.mxu0 0.0
    %102 = vmatpush1.msra.mxu0 %v66
    %103 = vmatprep.subr.mxu0 0.0
    %104 = vmatpush1.msra.mxu0 %v67
    %105 = vmatprep.subr.mxu0 0.0
    %106 = vmatpush1.msra.mxu0 %v68
    %107 = vmatprep.subr.mxu0 0.0
    %108 = vmatpush1.msra.mxu0 %v69
    %109 = vmatprep.subr.mxu0 0.0
    %110 = vmatpush1.msra.mxu0 %v70
    %111 = vmatprep.subr.mxu0 0.0
    %112 = vmatpush1.msra.mxu0 %v71
    %113 = vmatprep.subr.mxu0 0.0
    %114 = vmatpush1.msra.mxu0 %v72
    %115 = vmatprep.subr.mxu0 0.0
    %116 = vmatpush1.msra.mxu0 %v73
    %117 = vmatprep.subr.mxu0 0.0
    %118 = vmatpush1.msra.mxu0 0.0
    %119 = vmatprep.subr.mxu0 0.0
    %120 = vmatpush1.msra.mxu0 0.0
    %121 = vmatprep.subr.mxu0 0.0
    %122 = vmatpush1.msra.mxu0 0.0
    %123 = vmatprep.subr.mxu0 0.0
    %124 = vmatpush1.msra.mxu0 0.0
    %125 = vmatprep.subr.mxu0 0.0
    %126 = vmatpush1.msra.mxu0 0.0
    %127 = vmatprep.subr.mxu0 0.0
    %128 = vmatpush1.msra.mxu0 0.0
    %129 = vmatprep.subr.mxu0 0.0
    %130 = vmatpush1.msra.mxu0 0.0
    %131 = vmatprep.subr.mxu0 0.0
    %132 = vmatpush1.msra.mxu0 0.0
    %133 = vmatprep.subr.mxu0 0.0
    %134 = vmatpush1.msra.mxu0 0.0
    %135 = vmatprep.subr.mxu0 0.0
    %136 = vmatpush1.msra.mxu0 0.0
    %137 = vmatprep.subr.mxu0 0.0
    %138 = vmatpush1.msra.mxu0 0.0
    %139 = vmatprep.subr.mxu0 0.0
    %140 = vmatpush1.msra.mxu0 0.0
    %141 = vmatprep.subr.mxu0 0.0
    %142 = vmatpush1.msra.mxu0 0.0
    %143 = vmatprep.subr.mxu0 0.0
    %144 = vmatpush1.msra.mxu0 0.0
    %145 = vmatprep.subr.mxu0 0.0
    %146 = vmatpush1.msra.mxu0 0.0
    %147 = vmatprep.subr.mxu0 0.0
    %148 = vmatpush1.msra.mxu0 0.0
    %149 = vmatprep.mubr.f32.mxu0 0.0
    %150 = vmatmul.mubr.f32.gmra.mrb[0].mxu0 %v57
    %v151 = vpop.f32.mrb[0].mxu0
    %v152 = vadd.f32 %v84, %v151
    %v153 = vpop.f32.mrb[0].mxu0
    %154 = vdwg.mxu0
    %155 = vst [vmem:[#allocation8] sm:$0x3] %v152
    // Predicated region
    $region26: #{tpu_custom_call.1} parent=1 // pred_check
      _
    $region27: #{tpu_custom_call.1} parent=1 // pred_check_branch
      %157 = sbr.rel (0) target = $region29
    $region28: #{tpu_custom_call.1} parent=1 // pred_region
      %s159 = ssub.s32 32, 32
      %160 = vsyncadd [#allocation4], %s159
      %s162 = sshll.u32 [#allocation8], 4
      %s163 = int_to_ptr.vmem [resolvable:$true] %s162
      %165 = dma.vmem_to_hbm [thread:$0]  %s163, 32, %s3, [#allocation4]
    $region29: #{tpu_custom_call.1} parent=1 // pred_fallthru
      _
    // Predicated region
    $region30: #{tpu_custom_call.1} parent=1 // pred_check
      _
    $region31: #{tpu_custom_call.1} parent=1 // pred_check_branch
      %167 = sbr.rel (0) target = $region33
    $region32: #{tpu_custom_call.1} parent=1 // pred_region
      %168 = dma.done [#allocation4], 32
    $region33: #{tpu_custom_call.1} parent=1 // pred_fallthru
      _
    %169 = vsyncpa [#allocation3], 1
    %170 = vsyncpa [#allocation6], 1
    %171 = vsyncpa [#allocation4], 1

</llo_original>
